<compile_context>
chip_gen: v7x
topology: tpu7x:2x2x1
jax: 0.10.0
libtpu: 0.0.40
codegen_flags: <defaults>
</compile_context>

<pallas_src>
import math

import jax
import jax.numpy as jnp
from jax.experimental import pallas as pl
from jax.experimental.pallas import tpu as pltpu


def _sub_kernel(x_ref, c_ref, o_ref):
    # x_ref: (block_rows, Cw) tile, c_ref: (1, Cw) VMEM-resident constant.
    o_ref[...] = x_ref[...] - c_ref[...]


def _per_input_tile_bytes():
    """Generation-aware (tile bytes per input, scoped-VMEM limit override)."""
    try:
        kind = jax.devices()[0].device_kind.lower()
    except Exception:
        kind = ""
    if "v5 lite" in kind or "v5e" in kind or "v5lite" in kind:
        # v5e: 16 MiB default scoped VMEM; 4x double-buffered 2 MiB tiles = 8 MiB.
        return 2 << 20, None
    if "v7" in kind:
        # v7x: 8 MiB tiles amortize the ~0.35 us/step overhead at ~3.2 TB/s;
        # 4x tile = 32 MiB, so raise the scoped limit above the 32 MiB default
        # (physical VMEM per TC is 64 MiB).
        return 8 << 20, 48 << 20
    # v6e and anything unrecognized: 4 MiB tiles fit the 32 MiB default limit.
    return 4 << 20, None


def sub_constant(x, constant, *, force_pallas=False):
    """Computes x - constant (constant broadcast over leading dims of x).

    x:        (N, C, H, W)
    constant: (H, W)   -- the nn.Parameter of SubModelConstant
    """
    N, C, H, W = x.shape
    assert constant.shape == (H, W)

    # Match torch.sub type promotion (e.g. bf16 x - f32 param -> f32 result).
    out_dtype = jnp.result_type(x.dtype, constant.dtype)
    x = x.astype(out_dtype)
    constant = constant.astype(out_dtype)

    itemsize = jnp.dtype(out_dtype).itemsize
    nbytes = x.size * itemsize

    # Small-input fallback: pallas_call launch + pipeline prologue is several
    # microseconds; below ~8 MiB plain XLA fusion wins.
    if nbytes < (8 << 20) and not force_pallas:
        return x - constant[None, None, :, :]

    rows = N * C
    cols = H * W

    # Lane-dense layout: keep the last dim a multiple of 128 lanes when
    # possible (avoids masked vst.msk partial stores).  If H*W already is a
    # multiple of 128, nothing to do; otherwise group k rows into one wide row
    # and tile the (tiny) constant k times so the broadcast period divides the
    # lane width.
    if cols % 128 != 0:
        k = 128 // math.gcd(cols, 128)
        if rows % k == 0 and k * cols <= 8192:
            rows, cols = rows // k, k * cols
            x2 = x.reshape(rows, cols)
            c2 = jnp.tile(constant.reshape(-1), k).reshape(1, cols)
        else:
            # Full-extent last dim is still a legal block shape; stores for the
            # ragged lanes are masked (correct, just lane-sparse).
            x2 = x.reshape(rows, cols)
            c2 = constant.reshape(1, cols)
    else:
        x2 = x.reshape(rows, cols)
        c2 = constant.reshape(1, cols)

    # Dtype-aware sublane multiple: sub-32-bit dtypes pack along sublanes.
    sub_mult = {4: 8, 2: 16, 1: 32}.get(itemsize, 8)

    tile_bytes, vmem_limit = _per_input_tile_bytes()
    target_rows = (tile_bytes // max(1, cols * itemsize)) // sub_mult * sub_mult
    target_rows = max(sub_mult, target_rows)

    if rows <= sub_mult:
        # Full-extent row block (always a legal block shape); cannot split.
        block_rows = rows
    else:
        # Cap at ~rows/2 (rounded up to the sublane multiple) so mid-size
        # inputs still produce >= 2 blocks for the "parallel" axis to shard
        # across v7x's two TensorCores.
        half_rows = sub_mult * pl.cdiv(pl.cdiv(rows, 2), sub_mult)
        block_rows = max(sub_mult, min(target_rows, half_rows))

    # Ragged last block handled by Pallas masking (safe: pure elementwise op,
    # never copy this pattern into a reduction).
    grid = (pl.cdiv(rows, block_rows),)

    cost = pl.CostEstimate(
        flops=x.size,
        bytes_accessed=2 * x.size * itemsize + c2.size * itemsize,
        transcendentals=0,
    )

    out2 = pl.pallas_call(
        _sub_kernel,
        out_shape=jax.ShapeDtypeStruct((rows, cols), out_dtype),
        grid=grid,
        in_specs=[
            pl.BlockSpec((block_rows, cols), lambda i: (i, 0)),
            # Constant block index never changes -> stays resident in VMEM.
            pl.BlockSpec((1, cols), lambda i: (0, 0)),
        ],
        out_specs=pl.BlockSpec((block_rows, cols), lambda i: (i, 0)),
        compiler_params=pltpu.CompilerParams(
            dimension_semantics=("parallel",),
            vmem_limit_bytes=vmem_limit,
        ),
        cost_estimate=cost,
    )(x2, c2)

    return out2.reshape(N, C, H, W)


if __name__ == "__main__":
    key = jax.random.PRNGKey(0)

    N, C, H, W = 2, 4, 16, 16
    constant_shape = (H, W)

    x = jax.random.normal(key, (N, C, H, W), dtype=jnp.float32)
    # Matches torch.nn.Parameter(torch.zeros(constant_shape)) initialization.
    constant = jnp.zeros(constant_shape, dtype=jnp.float32)

    # force_pallas=True so the Pallas path is exercised even at this tiny size
    # (the production wrapper would route such small inputs to XLA fusion).
    out = sub_constant(x, constant, force_pallas=True)
    jax.block_until_ready(out)

    # Reference check against plain JAX broadcast subtraction.
    ref = x - constant[None, None, :, :]
    assert out.shape == x.shape and out.dtype == ref.dtype
    assert jnp.allclose(out, ref), "mismatch vs reference"

    print("KERNEL_OK")
</pallas_src>

<mosaic_0001>
module attributes {stable_mosaic.version = 11 : i64} {
  func.func @_sub_kernel(%arg0: i32, %arg1: memref<8x256xf32, #tpu.memory_space<vmem>>, %arg2: memref<1x256xf32, #tpu.memory_space<vmem>>, %arg3: memref<8x256xf32, #tpu.memory_space<vmem>>) attributes {dimension_semantics = [#tpu.dimension_semantics<parallel>], iteration_bounds = array<i64: 1>, scalar_prefetch = 0 : i64, scratch_operands = 0 : i64, tpu.core_type = #tpu.core_type<tc>, window_params = [{transform_indices = @transform_0, window_bounds = array<i64: 8, 256>}, {pipeline_mode = #tpu.pipeline_mode<synchronous>, transform_indices = @transform_1, window_bounds = array<i64: 1, 256>}, {transform_indices = @transform_2, window_bounds = array<i64: 8, 256>}]} {
    %c0 = arith.constant 0 : index
    %c0_0 = arith.constant 0 : index
    %0 = vector.load %arg1[%c0, %c0_0] : memref<8x256xf32, #tpu.memory_space<vmem>>, vector<8x256xf32>
    %c0_1 = arith.constant 0 : index
    %c0_2 = arith.constant 0 : index
    %1 = vector.load %arg2[%c0_1, %c0_2] : memref<1x256xf32, #tpu.memory_space<vmem>>, vector<1x256xf32>
    %2 = vector.broadcast %1 : vector<1x256xf32> to vector<8x256xf32>
    %3 = arith.subf %0, %2 : vector<8x256xf32>
    %c0_3 = arith.constant 0 : index
    %c0_4 = arith.constant 0 : index
    %4 = vector.load %arg3[%c0_3, %c0_4] : memref<8x256xf32, #tpu.memory_space<vmem>>, vector<8x256xf32>
    tpu.vector_store %arg3[%c0_3, %c0_4], %3 {strides = array<i32>} : memref<8x256xf32, #tpu.memory_space<vmem>>, vector<8x256xf32>,
    return
  }
  func.func @transform_0(%arg0: i32) -> (i32, i32) {
    %c0_i32 = arith.constant 0 : i32
    %c0_i32_0 = arith.constant 0 : i32
    return %arg0, %c0_i32 : i32, i32
  }
  func.func @transform_1(%arg0: i32) -> (i32, i32) {
    %c0_i32 = arith.constant 0 : i32
    %c0_i32_0 = arith.constant 0 : i32
    %c0_i32_1 = arith.constant 0 : i32
    return %c0_i32, %c0_i32_0 : i32, i32
  }
  func.func @transform_2(%arg0: i32) -> (i32, i32) {
    %c0_i32 = arith.constant 0 : i32
    %c0_i32_0 = arith.constant 0 : i32
    return %arg0, %c0_i32 : i32, i32
  }
}

</mosaic_0001>

<llo_original>
// kernel: tpu_custom_call.1
$region0: #{tpu_custom_call.1}
  #allocation0 [shape = 'u32[]', space=smem, size = 0x4, offset = 0x4, fixed_abs, tag = 'smem constant byte address 0x4 - core index']
  #allocation1 [shape = 'u32[144,128]{1,0:T(1,128)}', space=vmem, size = 0x12000, scoped, tag = 'internal scratch']
  %s0 = inlined_call_operand.hbm [shape: f32[8,256], index: 0, kind: input, shape index: {}]
  %s1 = inlined_call_operand.vmem [shape: f32[1,256], index: 1, kind: input, shape index: {}]
  %s2 = inlined_call_operand.hbm [shape: f32[8,256], index: 2, kind: output, shape index: {}]
  %s3 = sld [smem:[#allocation0]]
  $region22: #{tpu_custom_call.1} parent=0
    _
  %s5 = ssub.s32 1, %s3
  %s6 = scalar_select 0, %s5, %s3
  $region1: #{tpu_custom_call.1} parent=0
    #allocation2 [shape = 'u8[8192]{0}', space=vmem, size = 0x2000, scoped, tag = 'input window, operand 0, single buffered']
    #allocation3 [shape = 's32[1]{0}', space=sflag, size = 0x4, scoped, tag = 'scoped memory for tpu_custom_call.1']
    #allocation4 [shape = 's32[1]{0}', space=sflag, size = 0x4, scoped, tag = 'scoped memory for tpu_custom_call.1']
    #allocation5 [shape = 'u8[8192]{0}', space=vmem, size = 0x2000, scoped, tag = 'output window, operand 0, single buffered']
    %7 = vsyncpa [#allocation3], 0
    %8 = vsyncpa [#allocation4], 0
    // Predicated region
    $region2: #{tpu_custom_call.1} parent=1 // pred_check
      _
    $region3: #{tpu_custom_call.1} parent=1 // pred_check_branch
      %10 = sbr.rel (0) target = $region5
    $region4: #{tpu_custom_call.1} parent=1 // pred_region
      %s12 = ssub.s32 256, 256
      %13 = vsyncadd [#allocation3], %s12
      %s15 = sshll.u32 [#allocation2], 4
      %s16 = int_to_ptr.vmem [resolvable:$true] %s15
      %18 = dma.hbm_to_vmem [thread:$0]  %s0, 256, %s16, [#allocation3]
    $region5: #{tpu_custom_call.1} parent=1 // pred_fallthru
      _
    // Predicated region
    $region6: #{tpu_custom_call.1} parent=1 // pred_check
      _
    $region7: #{tpu_custom_call.1} parent=1 // pred_check_branch
      %20 = sbr.rel (0) target = $region9
    $region8: #{tpu_custom_call.1} parent=1 // pred_region
      _
    $region9: #{tpu_custom_call.1} parent=1 // pred_fallthru
      _
    // Predicated region
    $region10: #{tpu_custom_call.1} parent=1 // pred_check
      _
    $region11: #{tpu_custom_call.1} parent=1 // pred_check_branch
      %22 = sbr.rel (0) target = $region13
    $region12: #{tpu_custom_call.1} parent=1 // pred_region
      %23 = dma.done [#allocation3], 256
    $region13: #{tpu_custom_call.1} parent=1 // pred_fallthru
      _
    %v24 = vld [vmem:[#allocation2] sm:$0xff]
    %v25 = vld [vmem:[#allocation2 + $0x8] sm:$0xff]
    %v26 = vld [vmem:[%s1] sm:$0x3]
    %v28 = vlaneseq
    %v29 = vshrl.u32 %v28, 7
    %v30 = vsub.s32 0, %v29
    %v31 = vrot.slane %v26, %v30
    %v32 = vlaneseq
    %v33 = vshrl.u32 %v32, 7
    %v34 = vsub.s32 1, %v33
    %v35 = vrot.slane %v26, %v34
    %v38 = vsub.f32 %v24, %v31
    %v39 = vsub.f32 %v25, %v35
    %40 = vst [vmem:[#allocation5] sm:$0xff] %v38
    %41 = vst [vmem:[#allocation5 + $0x8] sm:$0xff] %v39
    // Predicated region
    $region14: #{tpu_custom_call.1} parent=1 // pred_check
      _
    $region15: #{tpu_custom_call.1} parent=1 // pred_check_branch
      %43 = sbr.rel (0) target = $region17
    $region16: #{tpu_custom_call.1} parent=1 // pred_region
      %s45 = ssub.s32 256, 256
      %46 = vsyncadd [#allocation4], %s45
      %s48 = sshll.u32 [#allocation5], 4
      %s49 = int_to_ptr.vmem [resolvable:$true] %s48
      %51 = dma.vmem_to_hbm [thread:$0]  %s49, 256, %s2, [#allocation4]
    $region17: #{tpu_custom_call.1} parent=1 // pred_fallthru
      _
    // Predicated region
    $region18: #{tpu_custom_call.1} parent=1 // pred_check
      _
    $region19: #{tpu_custom_call.1} parent=1 // pred_check_branch
      %53 = sbr.rel (0) target = $region21
    $region20: #{tpu_custom_call.1} parent=1 // pred_region
      %54 = dma.done [#allocation4], 256
    $region21: #{tpu_custom_call.1} parent=1 // pred_fallthru
      _
    %55 = vsyncpa [#allocation3], 1
    %56 = vsyncpa [#allocation4], 1

</llo_original>
